<compile_context>
chip_gen: v7x
topology: tpu7x:2x2x1
jax: 0.10.0
libtpu: 0.0.40
codegen_flags: <defaults>
</compile_context>

<pallas_src>
import math

import numpy as np
import jax
import jax.numpy as jnp
from jax import lax
from jax.experimental import pallas as pl
from jax.experimental.pallas import tpu as pltpu


# ---------------------------------------------------------------------------
# Kernel 1: fused QKV projection + RoPE (+ attention scale folded into q)
# ---------------------------------------------------------------------------
def qkv_rope_kernel(x_ref, w_ref, b_ref, cos_ref, sin_ref,
                    q_ref, k_ref, v_ref):
    TM, D = x_ref.shape[1], x_ref.shape[2]
    x = x_ref[0].astype(jnp.bfloat16)                      # (TM, D)

    # One wide, lane-dense MXU matmul for Q|K|V -> (TM, 3D), f32 accumulation.
    qkv = jnp.dot(x, w_ref[...], preferred_element_type=jnp.float32)
    qkv = qkv + b_ref[...]                                 # (1, 3D) bias broadcast
    q, k, v = qkv[:, :D], qkv[:, D:2 * D], qkv[:, 2 * D:]

    cos = cos_ref[...]                                     # (TM, D) f32
    sin = sin_ref[...]                                     # (TM, D) f32 (sign folded)
    even = (lax.broadcasted_iota(jnp.int32, (TM, D), 1) % 2) == 0

    def rope(t):
        # pair swap: out[2i] = t[2i+1], out[2i+1] = t[2i]
        # (two XLU lane rotations + a VPU parity select; no MXU work)
        swap = jnp.where(even,
                         pltpu.roll(t, D - 1, axis=1),     # t[j+1] at even lanes
                         pltpu.roll(t, 1, axis=1))         # t[j-1] at odd lanes
        return t * cos + swap * sin

    # Fold the softmax scale into q_rot (rotation is linear, so this is exact
    # w.r.t. the reference math up to bf16 rounding).
    scale = 1.0 / math.sqrt(D)
    q_ref[0] = (rope(q) * scale).astype(q_ref.dtype)
    k_ref[0] = rope(k).astype(k_ref.dtype)
    v_ref[0] = v.astype(v_ref.dtype)


# ---------------------------------------------------------------------------
# Kernel 2: flash-style causal attention with online softmax
# ---------------------------------------------------------------------------
def flash_attn_kernel(q_ref, k_ref, v_ref, o_ref, m_ref, l_ref, acc_ref):
    TQ = q_ref.shape[1]
    TK = k_ref.shape[1]
    qi = pl.program_id(1)
    ki = pl.program_id(2)

    @pl.when(ki == 0)
    def _init():
        m_ref[...] = jnp.full_like(m_ref, -1e30)
        l_ref[...] = jnp.zeros_like(l_ref)
        acc_ref[...] = jnp.zeros_like(acc_ref)

    # Skip kv tiles that lie entirely above the causal diagonal.
    @pl.when(qi * TQ + (TQ - 1) >= ki * TK)
    def _compute():
        q = q_ref[0]                                       # (TQ, D) bf16 (pre-scaled)
        k = k_ref[0]                                       # (TK, D) bf16
        s = lax.dot_general(q, k, (((1,), (1,)), ((), ())),
                            preferred_element_type=jnp.float32)
        row = qi * TQ + lax.broadcasted_iota(jnp.int32, (TQ, TK), 0)
        col = ki * TK + lax.broadcasted_iota(jnp.int32, (TQ, TK), 1)
        s = jnp.where(row >= col, s, -1e30)                # causal mask (f32)

        m_prev = m_ref[...]                                # (TQ, 1) f32
        m_new = jnp.maximum(m_prev, jnp.max(s, axis=-1, keepdims=True))
        alpha = jnp.exp(m_prev - m_new)
        p = jnp.exp(s - m_new)
        l_ref[...] = alpha * l_ref[...] + jnp.sum(p, axis=-1, keepdims=True)
        acc_ref[...] = alpha * acc_ref[...] + jnp.dot(
            p.astype(v_ref.dtype), v_ref[0], preferred_element_type=jnp.float32)
        m_ref[...] = m_new

    @pl.when(ki == pl.num_programs(2) - 1)
    def _finalize():
        o_ref[0] = (acc_ref[...] *
                    pl.reciprocal(l_ref[...], approx=True)).astype(o_ref.dtype)


# ---------------------------------------------------------------------------
# Wrapper
# ---------------------------------------------------------------------------
def rope_attention_head_forward(x, params, kv_cache=False,
                                return_attn_weights=False,
                                tile_proj=256, tile_q=128, tile_kv=256):
    # TODO(synk): kv_cache=True (stateful cross-call k_rot/v cache) and the
    # return_attn_weights=True extra output are not implemented.
    assert not kv_cache and not return_attn_weights
    B, C, D = x.shape
    assert D % 2 == 0
    TM = min(tile_proj, C)
    TQ = min(tile_q, C)
    TK = min(tile_kv, C)
    assert C % TM == 0 and C % TQ == 0 and C % TK == 0

    # Fuse the three projections into one lane-dense (D, 3D) bf16 weight.
    wqkv = jnp.concatenate([params["wq"], params["wk"], params["wv"]],
                           axis=1).astype(jnp.bfloat16)        # (D, 3D)
    bqkv = jnp.concatenate([params["bq"], params["bk"], params["bv"]],
                           axis=1).astype(jnp.float32)         # (1, 3D)
    cos = params["cos"].astype(jnp.float32)                    # (C, D)
    sin = params["sin_signed"].astype(jnp.float32)             # (C, D)

    q_rot, k_rot, v = pl.pallas_call(
        qkv_rope_kernel,
        out_shape=(jax.ShapeDtypeStruct((B, C, D), jnp.bfloat16),
                   jax.ShapeDtypeStruct((B, C, D), jnp.bfloat16),
                   jax.ShapeDtypeStruct((B, C, D), jnp.bfloat16)),
        grid_spec=pltpu.PrefetchScalarGridSpec(
            num_scalar_prefetch=0,
            grid=(B, C // TM),
            in_specs=[
                pl.BlockSpec((1, TM, D), lambda b, i: (b, i, 0)),   # x tile
                pl.BlockSpec((D, 3 * D), lambda b, i: (0, 0)),      # W (resident)
                pl.BlockSpec((1, 3 * D), lambda b, i: (0, 0)),      # bias
                pl.BlockSpec((TM, D), lambda b, i: (i, 0)),         # cos
                pl.BlockSpec((TM, D), lambda b, i: (i, 0)),         # sin (signed)
            ],
            out_specs=[pl.BlockSpec((1, TM, D), lambda b, i: (b, i, 0))] * 3,
        ),
        compiler_params=pltpu.CompilerParams(
            dimension_semantics=("parallel", "parallel")),
    )(x, wqkv, bqkv, cos, sin)

    out = pl.pallas_call(
        flash_attn_kernel,
        out_shape=jax.ShapeDtypeStruct((B, C, D), x.dtype),
        grid_spec=pltpu.PrefetchScalarGridSpec(
            num_scalar_prefetch=0,
            grid=(B, C // TQ, C // TK),
            in_specs=[
                pl.BlockSpec((1, TQ, D), lambda b, qi, ki: (b, qi, 0)),
                pl.BlockSpec((1, TK, D), lambda b, qi, ki: (b, ki, 0)),
                pl.BlockSpec((1, TK, D), lambda b, qi, ki: (b, ki, 0)),
            ],
            out_specs=pl.BlockSpec((1, TQ, D), lambda b, qi, ki: (b, qi, 0)),
            scratch_shapes=[pltpu.VMEM((TQ, 1), jnp.float32),      # running max
                            pltpu.VMEM((TQ, 1), jnp.float32),      # running sum
                            pltpu.VMEM((TQ, D), jnp.float32)],     # accumulator
        ),
        compiler_params=pltpu.CompilerParams(
            dimension_semantics=("parallel", "parallel", "arbitrary")),
    )(q_rot, k_rot, v)
    return out


# ---------------------------------------------------------------------------
# Deterministic parameter init (mirrors nn.Linear default init ranges)
# ---------------------------------------------------------------------------
def _lin_init(key, din, dout):
    kw, kb = jax.random.split(key)
    bound = 1.0 / math.sqrt(din)
    w = jax.random.uniform(kw, (din, dout), jnp.float32, -bound, bound)
    b = jax.random.uniform(kb, (1, dout), jnp.float32, -bound, bound)
    return w, b


def _rope_tables(C, D):
    """cos / sign-folded sin tables plus the dense R (used only by the reference)."""
    cos = np.zeros((C, D), np.float32)
    sin_signed = np.zeros((C, D), np.float32)
    R = np.zeros((C, D, D), np.float32)
    for i in range(D // 2):
        theta = 10000.0 ** (-2.0 * (i - 1) / D)    # matches get_rotary_matrix
        for m in range(C):
            c, s = math.cos(m * theta), math.sin(m * theta)
            cos[m, 2 * i] = cos[m, 2 * i + 1] = c
            sin_signed[m, 2 * i] = -s
            sin_signed[m, 2 * i + 1] = s
            R[m, 2 * i, 2 * i] = c
            R[m, 2 * i, 2 * i + 1] = -s
            R[m, 2 * i + 1, 2 * i] = s
            R[m, 2 * i + 1, 2 * i + 1] = c
    return jnp.asarray(cos), jnp.asarray(sin_signed), jnp.asarray(R)


def init_params(key, context_window, emb_dim):
    C, D = context_window, emb_dim
    kq, kk, kv = jax.random.split(key, 3)
    wq, bq = _lin_init(kq, D, D)
    wk, bk = _lin_init(kk, D, D)
    wv, bv = _lin_init(kv, D, D)
    cos, sin_signed, R = _rope_tables(C, D)
    return dict(wq=wq, bq=bq, wk=wk, bk=bk, wv=wv, bv=bv,
                cos=cos, sin_signed=sin_signed, R=R)


# ---------------------------------------------------------------------------
# Plain-JAX reference (same math as the torch module, for correctness check)
# ---------------------------------------------------------------------------
def reference(x, p):
    B, C, D = x.shape
    q = x @ p["wq"] + p["bq"]
    k = x @ p["wk"] + p["bk"]
    v = x @ p["wv"] + p["bv"]
    # q_rot[b, c] = R[c] @ q[b, c]  (== bmm(q.T01, R.T12).T01 in the torch code)
    q_rot = jnp.einsum("cde,bce->bcd", p["R"][:C], q)
    k_rot = jnp.einsum("cde,bce->bcd", p["R"][:C], k)
    s = jnp.einsum("bqd,bkd->bqk", q_rot, k_rot) / math.sqrt(D)
    mask = jnp.tril(jnp.ones((C, C), bool))
    s = jnp.where(mask[None], s, -jnp.inf)
    w = jax.nn.softmax(s, axis=-1)
    # dropout_p=0.2 is identity in eval mode
    return jnp.einsum("bqk,bkd->bqd", w, v)


# ---------------------------------------------------------------------------
if __name__ == "__main__":
    B, context_window, emb_dim = 2, 32, 128

    key = jax.random.PRNGKey(0)
    kx, kp = jax.random.split(key)
    x = jax.random.normal(kx, (B, context_window, emb_dim), jnp.float32)
    params = init_params(kp, context_window, emb_dim)

    out = rope_attention_head_forward(x, params, kv_cache=False)
    out = jax.block_until_ready(out)

    ref = jax.block_until_ready(reference(x, params))
    np.testing.assert_allclose(np.asarray(out), np.asarray(ref),
                               rtol=2e-2, atol=2e-2)

    print("KERNEL_OK")
</pallas_src>

<mosaic_0001>
module attributes {stable_mosaic.version = 11 : i64} {
  func.func @qkv_rope_kernel(%arg0: i32, %arg1: i32, %arg2: memref<1x32x128xf32, #tpu.memory_space<vmem>>, %arg3: memref<128x384xbf16, #tpu.memory_space<vmem>>, %arg4: memref<1x384xf32, #tpu.memory_space<vmem>>, %arg5: memref<32x128xf32, #tpu.memory_space<vmem>>, %arg6: memref<32x128xf32, #tpu.memory_space<vmem>>, %arg7: memref<1x32x128xbf16, #tpu.memory_space<vmem>>, %arg8: memref<1x32x128xbf16, #tpu.memory_space<vmem>>, %arg9: memref<1x32x128xbf16, #tpu.memory_space<vmem>>) attributes {dimension_semantics = [#tpu.dimension_semantics<parallel>, #tpu.dimension_semantics<parallel>], iteration_bounds = array<i64: 2, 1>, scalar_prefetch = 0 : i64, scratch_operands = 0 : i64, tpu.core_type = #tpu.core_type<tc>, window_params = [{transform_indices = @transform_0, window_bounds = array<i64: 1, 32, 128>}, {pipeline_mode = #tpu.pipeline_mode<synchronous>, transform_indices = @transform_1, window_bounds = array<i64: 128, 384>}, {pipeline_mode = #tpu.pipeline_mode<synchronous>, transform_indices = @transform_2, window_bounds = array<i64: 1, 384>}, {transform_indices = @transform_3, window_bounds = array<i64: 32, 128>}, {transform_indices = @transform_4, window_bounds = array<i64: 32, 128>}, {transform_indices = @transform_5, window_bounds = array<i64: 1, 32, 128>}, {transform_indices = @transform_6, window_bounds = array<i64: 1, 32, 128>}, {transform_indices = @transform_7, window_bounds = array<i64: 1, 32, 128>}]} {
    %c0 = arith.constant 0 : index
    %c0_0 = arith.constant 0 : index
    %c0_1 = arith.constant 0 : index
    %0 = vector.load %arg2[%c0, %c0_0, %c0_1] : memref<1x32x128xf32, #tpu.memory_space<vmem>>, vector<1x32x128xf32>
    %1 = vector.shape_cast %0 : vector<1x32x128xf32> to vector<32x128xf32>
    %2 = arith.truncf %1 : vector<32x128xf32> to vector<32x128xbf16>
    %c0_2 = arith.constant 0 : index
    %c0_3 = arith.constant 0 : index
    %3 = vector.load %arg3[%c0_2, %c0_3] : memref<128x384xbf16, #tpu.memory_space<vmem>>, vector<128x384xbf16>
    %cst = arith.constant dense<0.000000e+00> : vector<32x384xf32>
    %4 = tpu.matmul %2, %3, %cst {dimension_numbers = #tpu.dot_dimension_numbers<[1], [0], [0], [1], [0, 0, 1, 1], [], []>} : vector<32x128xbf16>, vector<128x384xbf16>, vector<32x384xf32> -> vector<32x384xf32>
    %c0_4 = arith.constant 0 : index
    %c0_5 = arith.constant 0 : index
    %5 = vector.load %arg4[%c0_4, %c0_5] : memref<1x384xf32, #tpu.memory_space<vmem>>, vector<1x384xf32>
    %6 = vector.broadcast %5 : vector<1x384xf32> to vector<32x384xf32>
    %7 = arith.addf %4, %6 : vector<32x384xf32>
    %8 = vector.extract_strided_slice %7 {offsets = [0, 0], sizes = [32, 128], strides = [1, 1]} : vector<32x384xf32> to vector<32x128xf32>
    %9 = vector.extract_strided_slice %7 {offsets = [0, 128], sizes = [32, 128], strides = [1, 1]} : vector<32x384xf32> to vector<32x128xf32>
    %10 = vector.extract_strided_slice %7 {offsets = [0, 256], sizes = [32, 128], strides = [1, 1]} : vector<32x384xf32> to vector<32x128xf32>
    %c0_6 = arith.constant 0 : index
    %c0_7 = arith.constant 0 : index
    %11 = vector.load %arg5[%c0_6, %c0_7] : memref<32x128xf32, #tpu.memory_space<vmem>>, vector<32x128xf32>
    %c0_8 = arith.constant 0 : index
    %c0_9 = arith.constant 0 : index
    %12 = vector.load %arg6[%c0_8, %c0_9] : memref<32x128xf32, #tpu.memory_space<vmem>>, vector<32x128xf32>
    %13 = tpu.iota {dimensions = array<i32: 1>} : vector<32x128xi32>
    %c2_i32 = arith.constant 2 : i32
    %c0_i32 = arith.constant 0 : i32
    %14 = arith.cmpi eq, %c2_i32, %c0_i32 : i32
    %c1_i32 = arith.constant 1 : i32
    %15 = arith.select %14, %c1_i32, %c2_i32 : i32
    %16 = vector.broadcast %15 : i32 to vector<32x128xi32>
    %17 = arith.remsi %13, %16 : vector<32x128xi32>
    %c0_i32_10 = arith.constant 0 : i32
    %18 = vector.broadcast %c0_i32_10 : i32 to vector<32x128xi32>
    %19 = arith.cmpi ne, %17, %18 : vector<32x128xi32>
    %c0_i32_11 = arith.constant 0 : i32
    %20 = vector.broadcast %c0_i32_11 : i32 to vector<32x128xi32>
    %21 = arith.cmpi slt, %17, %20 : vector<32x128xi32>
    %c0_i32_12 = arith.constant 0 : i32
    %22 = arith.cmpi slt, %15, %c0_i32_12 : i32
    %23 = vector.broadcast %22 : i1 to vector<32x128xi1>
    %24 = vector.broadcast %23 : vector<32x128xi1> to vector<32x128xi1>
    %25 = arith.xori %21, %24 : vector<32x128xi1>
    %26 = arith.andi %25, %19 : vector<32x128xi1>
    %27 = vector.broadcast %15 : i32 to vector<32x128xi32>
    %28 = arith.addi %17, %27 : vector<32x128xi32>
    %29 = arith.select %26, %28, %17 : vector<32x128xi1>, vector<32x128xi32>
    %c0_i32_13 = arith.constant 0 : i32
    %30 = vector.broadcast %c0_i32_13 : i32 to vector<32x128xi32>
    %31 = arith.cmpi eq, %29, %30 : vector<32x128xi32>
    %c127_i32 = arith.constant 127 : i32
    %32 = tpu.dynamic_rotate %8 by %c127_i32 dim 1 : vector<32x128xf32>, i32 -> vector<32x128xf32>
    %c1_i32_14 = arith.constant 1 : i32
    %33 = tpu.dynamic_rotate %8 by %c1_i32_14 dim 1 : vector<32x128xf32>, i32 -> vector<32x128xf32>
    %34 = arith.select %31, %32, %33 : vector<32x128xi1>, vector<32x128xf32>
    %35 = arith.mulf %8, %11 : vector<32x128xf32>
    %36 = arith.mulf %34, %12 : vector<32x128xf32>
    %37 = arith.addf %35, %36 : vector<32x128xf32>
    %cst_15 = arith.constant 0.0883883461 : f32
    %38 = vector.broadcast %cst_15 : f32 to vector<32x128xf32>
    %39 = arith.mulf %37, %38 : vector<32x128xf32>
    %40 = arith.truncf %39 : vector<32x128xf32> to vector<32x128xbf16>
    %c0_16 = arith.constant 0 : index
    %c0_17 = arith.constant 0 : index
    %c0_18 = arith.constant 0 : index
    %41 = vector.load %arg7[%c0_16, %c0_17, %c0_18] : memref<1x32x128xbf16, #tpu.memory_space<vmem>>, vector<1x32x128xbf16>
    %42 = vector.shape_cast %41 : vector<1x32x128xbf16> to vector<32x128xbf16>
    %43 = vector.shape_cast %40 : vector<32x128xbf16> to vector<1x32x128xbf16>
    tpu.vector_store %arg7[%c0_16, %c0_17, %c0_18], %43 {strides = array<i32>} : memref<1x32x128xbf16, #tpu.memory_space<vmem>>, vector<1x32x128xbf16>,
    %c127_i32_19 = arith.constant 127 : i32
    %44 = tpu.dynamic_rotate %9 by %c127_i32_19 dim 1 : vector<32x128xf32>, i32 -> vector<32x128xf32>
    %c1_i32_20 = arith.constant 1 : i32
    %45 = tpu.dynamic_rotate %9 by %c1_i32_20 dim 1 : vector<32x128xf32>, i32 -> vector<32x128xf32>
    %46 = arith.select %31, %44, %45 : vector<32x128xi1>, vector<32x128xf32>
    %47 = arith.mulf %9, %11 : vector<32x128xf32>
    %48 = arith.mulf %46, %12 : vector<32x128xf32>
    %49 = arith.addf %47, %48 : vector<32x128xf32>
    %50 = arith.truncf %49 : vector<32x128xf32> to vector<32x128xbf16>
    %c0_21 = arith.constant 0 : index
    %c0_22 = arith.constant 0 : index
    %c0_23 = arith.constant 0 : index
    %51 = vector.load %arg8[%c0_21, %c0_22, %c0_23] : memref<1x32x128xbf16, #tpu.memory_space<vmem>>, vector<1x32x128xbf16>
    %52 = vector.shape_cast %51 : vector<1x32x128xbf16> to vector<32x128xbf16>
    %53 = vector.shape_cast %50 : vector<32x128xbf16> to vector<1x32x128xbf16>
    tpu.vector_store %arg8[%c0_21, %c0_22, %c0_23], %53 {strides = array<i32>} : memref<1x32x128xbf16, #tpu.memory_space<vmem>>, vector<1x32x128xbf16>,
    %54 = arith.truncf %10 : vector<32x128xf32> to vector<32x128xbf16>
    %c0_24 = arith.constant 0 : index
    %c0_25 = arith.constant 0 : index
    %c0_26 = arith.constant 0 : index
    %55 = vector.load %arg9[%c0_24, %c0_25, %c0_26] : memref<1x32x128xbf16, #tpu.memory_space<vmem>>, vector<1x32x128xbf16>
    %56 = vector.shape_cast %55 : vector<1x32x128xbf16> to vector<32x128xbf16>
    %57 = vector.shape_cast %54 : vector<32x128xbf16> to vector<1x32x128xbf16>
    tpu.vector_store %arg9[%c0_24, %c0_25, %c0_26], %57 {strides = array<i32>} : memref<1x32x128xbf16, #tpu.memory_space<vmem>>, vector<1x32x128xbf16>,
    return
  }
  func.func @transform_0(%arg0: i32, %arg1: i32) -> (i32, i32, i32) {
    %c0_i32 = arith.constant 0 : i32
    %c0_i32_0 = arith.constant 0 : i32
    return %arg0, %arg1, %c0_i32 : i32, i32, i32
  }
  func.func @transform_1(%arg0: i32, %arg1: i32) -> (i32, i32) {
    %c0_i32 = arith.constant 0 : i32
    %c0_i32_0 = arith.constant 0 : i32
    %c0_i32_1 = arith.constant 0 : i32
    return %c0_i32, %c0_i32_0 : i32, i32
  }
  func.func @transform_2(%arg0: i32, %arg1: i32) -> (i32, i32) {
    %c0_i32 = arith.constant 0 : i32
    %c0_i32_0 = arith.constant 0 : i32
    %c0_i32_1 = arith.constant 0 : i32
    return %c0_i32, %c0_i32_0 : i32, i32
  }
  func.func @transform_3(%arg0: i32, %arg1: i32) -> (i32, i32) {
    %c0_i32 = arith.constant 0 : i32
    %c0_i32_0 = arith.constant 0 : i32
    return %arg1, %c0_i32 : i32, i32
  }
  func.func @transform_4(%arg0: i32, %arg1: i32) -> (i32, i32) {
    %c0_i32 = arith.constant 0 : i32
    %c0_i32_0 = arith.constant 0 : i32
    return %arg1, %c0_i32 : i32, i32
  }
  func.func @transform_5(%arg0: i32, %arg1: i32) -> (i32, i32, i32) {
    %c0_i32 = arith.constant 0 : i32
    %c0_i32_0 = arith.constant 0 : i32
    return %arg0, %arg1, %c0_i32 : i32, i32, i32
  }
  func.func @transform_6(%arg0: i32, %arg1: i32) -> (i32, i32, i32) {
    %c0_i32 = arith.constant 0 : i32
    %c0_i32_0 = arith.constant 0 : i32
    return %arg0, %arg1, %c0_i32 : i32, i32, i32
  }
  func.func @transform_7(%arg0: i32, %arg1: i32) -> (i32, i32, i32) {
    %c0_i32 = arith.constant 0 : i32
    %c0_i32_0 = arith.constant 0 : i32
    return %arg0, %arg1, %c0_i32 : i32, i32, i32
  }
}

</mosaic_0001>

<llo_original>
// kernel: tpu_custom_call.1
$region0: #{tpu_custom_call.1}
  #allocation0 [shape = 'u32[]', space=smem, size = 0x4, offset = 0x4, fixed_abs, tag = 'smem constant byte address 0x4 - core index']
  #allocation1 [shape = 'u32[144,128]{1,0:T(1,128)}', space=vmem, size = 0x12000, scoped, tag = 'internal scratch']
  %s0 = inlined_call_operand.hbm [shape: f32[2,32,128], index: 0, kind: input, shape index: {}]
  %s1 = inlined_call_operand.hbm [shape: bf16[128,384], index: 1, kind: input, shape index: {}]
  %s2 = inlined_call_operand.vmem [shape: f32[1,384], index: 2, kind: input, shape index: {}]
  %s3 = inlined_call_operand.hbm [shape: f32[32,128], index: 3, kind: input, shape index: {}]
  %s4 = inlined_call_operand.hbm [shape: f32[32,128], index: 4, kind: input, shape index: {}]
  %s5 = inlined_call_operand.hbm [shape: bf16[2,32,128], index: 5, kind: output, shape index: {0}]
  %s6 = inlined_call_operand.hbm [shape: bf16[2,32,128], index: 6, kind: output, shape index: {1}]
  %s7 = inlined_call_operand.hbm [shape: bf16[2,32,128], index: 7, kind: output, shape index: {2}]
  %8 = xla_tuple %s5, %s6, %s7
  %s9 = sld [smem:[#allocation0]]
  $region85: #{tpu_custom_call.1} parent=0
    _
  %s11 = ssub.s32 1, %s9
  %s12 = scalar_select 0, %s11, %s9
  $region1: #{tpu_custom_call.1} parent=0
    #allocation2 [shape = 'u8[32768]{0}', space=vmem, size = 0x8000, scoped, tag = 'input window, operand 0']
    #allocation3 [shape = 's32[2]{0}', space=sflag, size = 0x8, scoped, tag = 'scoped memory for tpu_custom_call.1']
    #allocation4 [shape = 's32[2]{0}', space=sflag, size = 0x8, scoped, tag = 'scoped memory for tpu_custom_call.1']
    #allocation5 [shape = 'u8[98304]{0}', space=vmem, size = 0x18000, scoped, tag = 'input window, operand 1, single buffered']
    #allocation6 [shape = 's32[1]{0}', space=sflag, size = 0x4, scoped, tag = 'scoped memory for tpu_custom_call.1']
    #allocation7 [shape = 'u8[16384]{0}', space=vmem, size = 0x4000, scoped, tag = 'input window, operand 3, single buffered']
    #allocation8 [shape = 'u8[16384]{0}', space=vmem, size = 0x4000, scoped, tag = 'input window, operand 4, single buffered']
    #allocation9 [shape = 's32[1]{0}', space=sflag, size = 0x4, scoped, tag = 'scoped memory for tpu_custom_call.1']
    #allocation10 [shape = 'u8[16384]{0}', space=vmem, size = 0x4000, scoped, tag = 'output window, operand 0']
    #allocation11 [shape = 'u8[16384]{0}', space=vmem, size = 0x4000, scoped, tag = 'output window, operand 1']
    #allocation12 [shape = 's32[2]{0}', space=sflag, size = 0x8, scoped, tag = 'scoped memory for tpu_custom_call.1']
    #allocation13 [shape = 'u8[16384]{0}', space=vmem, size = 0x4000, scoped, tag = 'output window, operand 2']
    %13 = vsyncpa [#allocation3], 0
    %s14 = scalar_lea.sflag [#allocation3], 1
    %15 = vsyncpa %s14, 0
    %16 = vsyncpa [#allocation6], 0
    %17 = vsyncpa [#allocation9], 0
    %18 = vsyncpa [#allocation4], 0
    %s19 = scalar_lea.sflag [#allocation4], 1
    %20 = vsyncpa %s19, 0
    %21 = vsyncpa [#allocation12], 0
    %s22 = scalar_lea.sflag [#allocation12], 1
    %23 = vsyncpa %s22, 0
    loop: start=0, step=1, limit=4
    $region2: #{tpu_custom_call.1} parent=1 // loop_pre_header
      _
    $region3: #{tpu_custom_call.1} parent=1 // loop_header
      %s25 = sphi 0, %s29
      %p26 = scmp.ge.s32.totalorder %s25, 4
      %s32 = sphi 0, %s44
      %s33 = sphi 0, %s40
      %s34 = sphi 0, %s32
      %s35 = sphi 0, %s33
      %s36 = sphi 0, %s34
      %s37 = sphi 0, %s35
      %s49 = sphi 0, %s51
      %s52 = sphi 0, %s49
      %s53 = sphi 0, %s52
      %s69 = sphi 0, %s53
      %s73 = sphi 0, %s73
      %s75 = sphi 0, %s73
      %s76 = sphi 0, %s75
      %s90 = sphi 0, %s76
      %s94 = sphi 0, %s94
      %s96 = sphi 0, %s94
      %s97 = sphi 0, %s96
      %s111 = sphi 0, %s97
      %s117 = sphi 0, %s119
      %s120 = sphi 0, %s117
      %s121 = sphi 0, %s120
      %s137 = sphi 0, %s121
      %s143 = sphi 0, %s145
      %s146 = sphi 0, %s143
      %s147 = sphi 0, %s146
      %s163 = sphi 0, %s147
      %s171 = sphi 0, %s173
      %s174 = sphi 0, %s171
      %s175 = sphi 0, %s174
      %s191 = sphi 0, %s175
      %s199 = sphi 0, %s201
      %s202 = sphi 0, %s199
      %s203 = sphi 0, %s202
      %s219 = sphi 0, %s203
      %s227 = sphi 0, %s229
      %s230 = sphi 0, %s227
      %s231 = sphi 0, %s230
      %s247 = sphi 0, %s231
    $region4: #{tpu_custom_call.1} parent=1 // loop_header_branch
      %28 = sbr.rel (%p26) target = $region8
    $region5: #{tpu_custom_call.1} parent=1 // loop_body
      %s30 = ssub.s32 %s25, 1
      %s31 = ssub.s32 %s25, 2
      %s38 = sadd.s32 1, %s33
      %p39 = scmp.ge.s32.totalorder %s38, 1
      %s40 = scalar_select %p39, 0, %s38
      %s41 = sadd.s32 1, %s32
      %s42 = scalar_select %p39, %s41, %s32
      %p43 = scmp.ge.s32.totalorder %s42, 2
      %s44 = scalar_select %p43, 0, %s42
      %s45 = ssub.s32 %s32, %s44
      %s46 = ssub.s32 %s33, %s40
      %s47 = sor.u32 %s45, %s46
      %p48 = scmp.eq.s32.totalorder %s47, 0
      %s50 = sadd.s32 %s49, 1
      %s51 = scalar_select %p48, %s49, %s50
      %p54 = pneg %p48
      %p55 = scmp.eq.s32.totalorder %s25, 1
      %p56 = por %p54, %p55
      %p57 = scmp.ne.s32.totalorder %s49, %s52
      %p58 = scmp.eq.s32.totalorder %s25, 0
      %p59 = por %p57, %p58
      %p60 = scmp.ne.s32.totalorder %s49, %s52
      %p61 = scmp.eq.s32.totalorder %s30, 1
      %p62 = por %p60, %p61
      %p63 = scmp.ne.s32.totalorder %s52, %s53
      %p64 = scmp.eq.s32.totalorder %s30, 0
      %p65 = por %p63, %p64
      %p66 = scmp.ne.s32.totalorder %s52, %s53
      %p67 = scmp.eq.s32.totalorder %s31, 1
      %p68 = por %p66, %p67
      %p70 = scmp.ne.s32.totalorder %s53, %s69
      %p71 = scmp.eq.s32.totalorder %s31, 0
      %p72 = por %p70, %p71
      %s74 = sadd.s32 %s73, 1
      %p77 = scmp.eq.s32.totalorder %s25, 1
      %p78 = scmp.ne.s32.totalorder %s73, %s75
      %p79 = scmp.eq.s32.totalorder %s25, 0
      %p80 = por %p78, %p79
      %p81 = scmp.ne.s32.totalorder %s73, %s75
      %p82 = scmp.eq.s32.totalorder %s30, 1
      %p83 = por %p81, %p82
      %p84 = scmp.ne.s32.totalorder %s75, %s76
      %p85 = scmp.eq.s32.totalorder %s30, 0
      %p86 = por %p84, %p85
      %p87 = scmp.ne.s32.totalorder %s75, %s76
      %p88 = scmp.eq.s32.totalorder %s31, 1
      %p89 = por %p87, %p88
      %p91 = scmp.ne.s32.totalorder %s76, %s90
      %p92 = scmp.eq.s32.totalorder %s31, 0
      %p93 = por %p91, %p92
      %s95 = sadd.s32 %s94, 1
      %p98 = scmp.eq.s32.totalorder %s25, 1
      %p99 = scmp.ne.s32.totalorder %s94, %s96
      %p100 = scmp.eq.s32.totalorder %s25, 0
      %p101 = por %p99, %p100
      %p102 = scmp.ne.s32.totalorder %s94, %s96
      %p103 = scmp.eq.s32.totalorder %s30, 1
      %p104 = por %p102, %p103
      %p105 = scmp.ne.s32.totalorder %s96, %s97
      %p106 = scmp.eq.s32.totalorder %s30, 0
      %p107 = por %p105, %p106
      %p108 = scmp.ne.s32.totalorder %s96, %s97
      %p109 = scmp.eq.s32.totalorder %s31, 1
      %p110 = por %p108, %p109
      %p112 = scmp.ne.s32.totalorder %s97, %s111
      %p113 = scmp.eq.s32.totalorder %s31, 0
      %p114 = por %p112, %p113
      %s115 = ssub.s32 %s33, %s40
      %p116 = scmp.eq.s32.totalorder %s115, 0
      %s118 = sadd.s32 %s117, 1
      %s119 = scalar_select %p116, %s117, %s118
      %p122 = pneg %p116
      %p123 = scmp.eq.s32.totalorder %s25, 1
      %p124 = por %p122, %p123
      %p125 = scmp.ne.s32.totalorder %s117, %s120
      %p126 = scmp.eq.s32.totalorder %s25, 0
      %p127 = por %p125, %p126
      %p128 = scmp.ne.s32.totalorder %s117, %s120
      %p129 = scmp.eq.s32.totalorder %s30, 1
      %p130 = por %p128, %p129
      %p131 = scmp.ne.s32.totalorder %s120, %s121
      %p132 = scmp.eq.s32.totalorder %s30, 0
      %p133 = por %p131, %p132
      %p134 = scmp.ne.s32.totalorder %s120, %s121
      %p135 = scmp.eq.s32.totalorder %s31, 1
      %p136 = por %p134, %p135
      %p138 = scmp.ne.s32.totalorder %s121, %s137
      %p139 = scmp.eq.s32.totalorder %s31, 0
      %p140 = por %p138, %p139
      %s141 = ssub.s32 %s33, %s40
      %p142 = scmp.eq.s32.totalorder %s141, 0
      %s144 = sadd.s32 %s143, 1
      %s145 = scalar_select %p142, %s143, %s144
      %p148 = pneg %p142
      %p149 = scmp.eq.s32.totalorder %s25, 1
      %p150 = por %p148, %p149
      %p151 = scmp.ne.s32.totalorder %s143, %s146
      %p152 = scmp.eq.s32.totalorder %s25, 0
      %p153 = por %p151, %p152
      %p154 = scmp.ne.s32.totalorder %s143, %s146
      %p155 = scmp.eq.s32.totalorder %s30, 1
      %p156 = por %p154, %p155
      %p157 = scmp.ne.s32.totalorder %s146, %s147
      %p158 = scmp.eq.s32.totalorder %s30, 0
      %p159 = por %p157, %p158
      %p160 = scmp.ne.s32.totalorder %s146, %s147
      %p161 = scmp.eq.s32.totalorder %s31, 1
      %p162 = por %p160, %p161
      %p164 = scmp.ne.s32.totalorder %s147, %s163
      %p165 = scmp.eq.s32.totalorder %s31, 0
      %p166 = por %p164, %p165
      %s167 = ssub.s32 %s32, %s44
      %s168 = ssub.s32 %s33, %s40
      %s169 = sor.u32 %s167, %s168
      %p170 = scmp.eq.s32.totalorder %s169, 0
      %s172 = sadd.s32 %s171, 1
      %s173 = scalar_select %p170, %s171, %s172
      %p176 = pneg %p170
      %p177 = scmp.eq.s32.totalorder %s25, 1
      %p178 = por %p176, %p177
      %p179 = scmp.ne.s32.totalorder %s171, %s174
      %p180 = scmp.eq.s32.totalorder %s25, 0
      %p181 = por %p179, %p180
      %p182 = scmp.ne.s32.totalorder %s171, %s174
      %p183 = scmp.eq.s32.totalorder %s30, 1
      %p184 = por %p182, %p183
      %p185 = scmp.ne.s32.totalorder %s174, %s175
      %p186 = scmp.eq.s32.totalorder %s30, 0
      %p187 = por %p185, %p186
      %p188 = scmp.ne.s32.totalorder %s174, %s175
      %p189 = scmp.eq.s32.totalorder %s31, 1
      %p190 = por %p188, %p189
      %p192 = scmp.ne.s32.totalorder %s175, %s191
      %p193 = scmp.eq.s32.totalorder %s31, 0
      %p194 = por %p192, %p193
      %s195 = ssub.s32 %s32, %s44
      %s196 = ssub.s32 %s33, %s40
      %s197 = sor.u32 %s195, %s196
      %p198 = scmp.eq.s32.totalorder %s197, 0
      %s200 = sadd.s32 %s199, 1
      %s201 = scalar_select %p198, %s199, %s200
      %p204 = pneg %p198
      %p205 = scmp.eq.s32.totalorder %s25, 1
      %p206 = por %p204, %p205
      %p207 = scmp.ne.s32.totalorder %s199, %s202
      %p208 = scmp.eq.s32.totalorder %s25, 0
      %p209 = por %p207, %p208
      %p210 = scmp.ne.s32.totalorder %s199, %s202
      %p211 = scmp.eq.s32.totalorder %s30, 1
      %p212 = por %p210, %p211
      %p213 = scmp.ne.s32.totalorder %s202, %s203
      %p214 = scmp.eq.s32.totalorder %s30, 0
      %p215 = por %p213, %p214
      %p216 = scmp.ne.s32.totalorder %s202, %s203
      %p217 = scmp.eq.s32.totalorder %s31, 1
      %p218 = por %p216, %p217
      %p220 = scmp.ne.s32.totalorder %s203, %s219
      %p221 = scmp.eq.s32.totalorder %s31, 0
      %p222 = por %p220, %p221
      %s223 = ssub.s32 %s32, %s44
      %s224 = ssub.s32 %s33, %s40
      %s225 = sor.u32 %s223, %s224
      %p226 = scmp.eq.s32.totalorder %s225, 0
      %s228 = sadd.s32 %s227, 1
      %s229 = scalar_select %p226, %s227, %s228
      %p232 = pneg %p226
      %p233 = scmp.eq.s32.totalorder %s25, 1
      %p234 = por %p232, %p233
      %p235 = scmp.ne.s32.totalorder %s227, %s230
      %p236 = scmp.eq.s32.totalorder %s25, 0
      %p237 = por %p235, %p236
      %p238 = scmp.ne.s32.totalorder %s227, %s230
      %p239 = scmp.eq.s32.totalorder %s30, 1
      %p240 = por %p238, %p239
      %p241 = scmp.ne.s32.totalorder %s230, %s231
      %p242 = scmp.eq.s32.totalorder %s30, 0
      %p243 = por %p241, %p242
      %p244 = scmp.ne.s32.totalorder %s230, %s231
      %p245 = scmp.eq.s32.totalorder %s31, 1
      %p246 = por %p244, %p245
      %p248 = scmp.ne.s32.totalorder %s231, %s247
      %p249 = scmp.eq.s32.totalorder %s31, 0
      %p250 = por %p248, %p249
      %p251 = scmp.le.s32.totalorder 1, %s25
      %p252 = scmp.lt.s32.totalorder %s25, 3
      %p253 = pnand %p251, %p252
      %p254 = pneg %p253
      // Predicated region
      $region9: #{tpu_custom_call.1} parent=5 // pred_check
        _
      $region10: #{tpu_custom_call.1} parent=5 // pred_check_branch
        %256 = sbr.rel (%p253) target = $region12
      $region11: #{tpu_custom_call.1} parent=5 // pred_region
        %s257 = ssub.s32 %s25, 1
        // Predicated region
        $region13: #{tpu_custom_call.1} parent=11 // pred_check
          %p258 = pneg %p86
        $region14: #{tpu_custom_call.1} parent=11 // pred_check_branch
          %260 = sbr.rel (%p258) target = $region16
        $region15: #{tpu_custom_call.1} parent=11 // pred_region
          %s262 = ssub.s32 3072, 3072
          %263 = vsyncadd [#allocation6], %s262
          %s264 = sshll.u32 [#allocation5], 4
          %s265 = int_to_ptr.vmem [resolvable:$true] %s264
          %270 = dma.hbm_to_vmem [thread:$0]  %s1, 3072, %s265, [#allocation6], 192, 192, 12
        $region16: #{tpu_custom_call.1} parent=11 // pred_fallthru
          _
        // Predicated region
        $region17: #{tpu_custom_call.1} parent=11 // pred_check
          %p271 = pneg %p107
        $region18: #{tpu_custom_call.1} parent=11 // pred_check_branch
          %273 = sbr.rel (%p271) target = $region20
        $region19: #{tpu_custom_call.1} parent=11 // pred_region
          _
        $region20: #{tpu_custom_call.1} parent=11 // pred_fallthru
          _
        // Predicated region
        $region21: #{tpu_custom_call.1} parent=11 // pred_check
          %p274 = pneg %p133
        $region22: #{tpu_custom_call.1} parent=11 // pred_check_branch
          %276 = sbr.rel (%p274) target = $region24
        $region23: #{tpu_custom_call.1} parent=11 // pred_region
          %s277 = smul.u32 4, %s35
          %s279 = ssub.s32 512, 512
          %280 = vsyncadd [#allocation6], %s279
          %s281 = smul.addr %s277, 128
          %s282 = scalar_lea.hbm %s3, %s281
          %s283 = sshll.u32 [#allocation7], 4
          %s284 = int_to_ptr.vmem [resolvable:$true] %s283
          %289 = dma.hbm_to_vmem [thread:$0]  %s282, 512, %s284, [#allocation6], 128, 128, 8
        $region24: #{tpu_custom_call.1} parent=11 // pred_fallthru
          _
        // Predicated region
        $region25: #{tpu_custom_call.1} parent=11 // pred_check
          %p290 = pneg %p159
        $region26: #{tpu_custom_call.1} parent=11 // pred_check_branch
          %292 = sbr.rel (%p290) target = $region28
        $region27: #{tpu_custom_call.1} parent=11 // pred_region
          %s293 = smul.u32 4, %s35
          %s295 = ssub.s32 512, 512
          %296 = vsyncadd [#allocation9], %s295
          %s297 = smul.addr %s293, 128
          %s298 = scalar_lea.hbm %s4, %s297
          %s299 = sshll.u32 [#allocation8], 4
          %s300 = int_to_ptr.vmem [resolvable:$true] %s299
          %305 = dma.hbm_to_vmem [thread:$0]  %s298, 512, %s300, [#allocation9], 128, 128, 8
        $region28: #{tpu_custom_call.1} parent=11 // pred_fallthru
          _
      $region12: #{tpu_custom_call.1} parent=5 // pred_fallthru
        _
      %p306 = scmp.lt.s32.totalorder %s25, 2
      // Predicated region
      $region29: #{tpu_custom_call.1} parent=5 // pred_check
        %p307 = pneg %p306
      $region30: #{tpu_custom_call.1} parent=5 // pred_check_branch
        %309 = sbr.rel (%p307) target = $region32
      $region31: #{tpu_custom_call.1} parent=5 // pred_region
        // Predicated region
        $region33: #{tpu_custom_call.1} parent=31 // pred_check
          %p310 = pneg %p59
        $region34: #{tpu_custom_call.1} parent=31 // pred_check_branch
          %312 = sbr.rel (%p310) target = $region36
        $region35: #{tpu_custom_call.1} parent=31 // pred_region
          %s313 = sand.u32 %s49, 1
          %s314 = scalar_lea.sflag [#allocation3], %s313
          %s315 = sand.u32 %s49, 1
          %s316 = smul.addr %s315, 32
          %s317 = scalar_lea.vmem [#allocation2], %s316
          %s318 = smul.u32 4, %s33
          %s320 = ssub.s32 512, 512
          %321 = vsyncadd %s314, %s320
          %s322 = smul.addr %s32, 4
          %s323 = sadd.s32 %s318, %s322
          %s324 = smul.addr %s323, 128
          %s325 = scalar_lea.hbm %s0, %s324
          %s326 = sshll.u32 %s317, 4
          %s327 = int_to_ptr.vmem [resolvable:$true] %s326
          %332 = dma.hbm_to_vmem [thread:$0]  %s325, 512, %s327, %s314, 128, 128, 8
        $region36: #{tpu_custom_call.1} parent=31 // pred_fallthru
          _
      $region32: #{tpu_custom_call.1} parent=5 // pred_fallthru
        _
      %p333 = scmp.le.s32.totalorder 1, %s25
      %p334 = scmp.lt.s32.totalorder %s25, 3
      %p335 = pnand %p333, %p334
      %p336 = pneg %p335
      // Predicated region
      $region37: #{tpu_custom_call.1} parent=5 // pred_check
        _
      $region38: #{tpu_custom_call.1} parent=5 // pred_check_branch
        %338 = sbr.rel (%p335) target = $region40
      $region39: #{tpu_custom_call.1} parent=5 // pred_region
        %s339 = ssub.s32 %s25, 1
        %s340 = sand.u32 %s52, 1
        %s341 = scalar_lea.sflag [#allocation3], %s340
        %s342 = sand.u32 %s52, 1
        %s343 = smul.addr %s342, 32
        %s344 = scalar_lea.vmem [#allocation2], %s343
        // Predicated region
        $region41: #{tpu_custom_call.1} parent=39 // pred_check
          %p345 = pneg %p65
        $region42: #{tpu_custom_call.1} parent=39 // pred_check_branch
          %347 = sbr.rel (%p345) target = $region44
        $region43: #{tpu_custom_call.1} parent=39 // pred_region
          %348 = dma.done %s341, 512
        $region44: #{tpu_custom_call.1} parent=39 // pred_fallthru
          _
        // Predicated region
        $region45: #{tpu_custom_call.1} parent=39 // pred_check
          %p349 = pneg %p86
        $region46: #{tpu_custom_call.1} parent=39 // pred_check_branch
          %351 = sbr.rel (%p349) target = $region48
        $region47: #{tpu_custom_call.1} parent=39 // pred_region
          %352 = dma.done [#allocation6], 3072
        $region48: #{tpu_custom_call.1} parent=39 // pred_fallthru
          _
        // Predicated region
        $region49: #{tpu_custom_call.1} parent=39 // pred_check
          %p353 = pneg %p133
        $region50: #{tpu_custom_call.1} parent=39 // pred_check_branch
          %355 = sbr.rel (%p353) target = $region52
        $region51: #{tpu_custom_call.1} parent=39 // pred_region
          %356 = dma.done [#allocation6], 512
        $region52: #{tpu_custom_call.1} parent=39 // pred_fallthru
          _
        // Predicated region
        $region53: #{tpu_custom_call.1} parent=39 // pred_check
          %p357 = pneg %p159
        $region54: #{tpu_custom_call.1} parent=39 // pred_check_branch
          %359 = sbr.rel (%p357) target = $region56
        $region55: #{tpu_custom_call.1} parent=39 // pred_region
          %360 = dma.done [#allocation9], 512
        $region56: #{tpu_custom_call.1} parent=39 // pred_fallthru
          _
        %s361 = sand.u32 %s52, 1
        %s362 = scalar_lea.sflag [#allocation3], %s361
        %s363 = sand.u32 %s52, 1
        %s364 = smul.addr %s363, 32
        %s365 = scalar_lea.vmem [#allocation2], %s364
        %p366 = pneg %p65
        %p367 = pneg %p62
        %p368 = pneg %p86
        %p369 = pneg %p83
        %p370 = pneg %p107
        %p371 = pneg %p104
        %p372 = pneg %p133
        %p373 = pneg %p130
        %p374 = pneg %p159
        %p375 = pneg %p156
        %p376 = pneg %p187
        %p377 = pneg %p184
        %s378 = sand.u32 %s174, 1
        %s379 = scalar_lea.sflag [#allocation4], %s378
        %s380 = sand.u32 %s174, 1
        %s381 = smul.addr %s380, 16
        %s382 = scalar_lea.vmem [#allocation10], %s381
        %p383 = pneg %p215
        %p384 = pneg %p212
        %s385 = sand.u32 %s30, 1
        %s386 = scalar_lea.sflag [#allocation12], %s385
        %s387 = sand.u32 %s202, 1
        %s388 = smul.addr %s387, 16
        %s389 = scalar_lea.vmem [#allocation11], %s388
        %p390 = pneg %p243
        %p391 = pneg %p240
        %s392 = sand.u32 %s30, 1
        %s393 = scalar_lea.sflag [#allocation12], %s392
        %s394 = sand.u32 %s230, 1
        %s395 = smul.addr %s394, 16
        %s396 = scalar_lea.vmem [#allocation13], %s395
        %s397 = smul.u32 4, %s35
        %s398 = smul.u32 4, %s35
        %s399 = smul.u32 4, %s35
        %s400 = smul.u32 4, %s35
        %s401 = smul.u32 4, %s35
        %s402 = smul.u32 4, %s35
        %v404 = vld [vmem:[%s344] sm:$0xff]
        %v405 = vld [vmem:[%s344 + $0x8] sm:$0xff]
        %v406 = vld [vmem:[%s344 + $0x10] sm:$0xff]
        %v407 = vld [vmem:[%s344 + $0x18] sm:$0xff]
        %v408 = vpack.c.bf16 %v405, %v404
        %v409 = vpack.c.bf16 %v407, %v406
        %v410 = vld [vmem:[#allocation5] sm:$0xff]
        %v411 = vld [vmem:[#allocation5 + $0x8] sm:$0xf]
        %v412 = vld [vmem:[#allocation5 + $0xc] sm:$0xff]
        %v413 = vld [vmem:[#allocation5 + $0x14] sm:$0xf]
        %v414 = vld [vmem:[#allocation5 + $0x18] sm:$0xff]
        %v415 = vld [vmem:[#allocation5 + $0x20] sm:$0xf]
        %v416 = vld [vmem:[#allocation5 + $0x24] sm:$0xff]
        %v417 = vld [vmem:[#allocation5 + $0x2c] sm:$0xf]
        %v418 = vld [vmem:[#allocation5 + $0x30] sm:$0xff]
        %v419 = vld [vmem:[#allocation5 + $0x38] sm:$0xf]
        %v420 = vld [vmem:[#allocation5 + $0x3c] sm:$0xff]
        %v421 = vld [vmem:[#allocation5 + $0x44] sm:$0xf]
        %v422 = vld [vmem:[#allocation5 + $0x48] sm:$0xff]
        %v423 = vld [vmem:[#allocation5 + $0x50] sm:$0xf]
        %v424 = vld [vmem:[#allocation5 + $0x54] sm:$0xff]
        %v425 = vld [vmem:[#allocation5 + $0x5c] sm:$0xf]
        %v426 = vld [vmem:[#allocation5 + $0x60] sm:$0xff]
        %v427 = vld [vmem:[#allocation5 + $0x68] sm:$0xf]
        %v428 = vld [vmem:[#allocation5 + $0x6c] sm:$0xff]
        %v429 = vld [vmem:[#allocation5 + $0x74] sm:$0xf]
        %v430 = vld [vmem:[#allocation5 + $0x78] sm:$0xff]
        %v431 = vld [vmem:[#allocation5 + $0x80] sm:$0xf]
        %v432 = vld [vmem:[#allocation5 + $0x84] sm:$0xff]
        %v433 = vld [vmem:[#allocation5 + $0x8c] sm:$0xf]
        %v434 = vld [vmem:[#allocation5 + $0x90] sm:$0xff]
        %v435 = vld [vmem:[#allocation5 + $0x98] sm:$0xf]
        %v436 = vld [vmem:[#allocation5 + $0x9c] sm:$0xff]
        %v437 = vld [vmem:[#allocation5 + $0xa4] sm:$0xf]
        %v438 = vld [vmem:[#allocation5 + $0xa8] sm:$0xff]
        %v439 = vld [vmem:[#allocation5 + $0xb0] sm:$0xf]
        %v440 = vld [vmem:[#allocation5 + $0xb4] sm:$0xff]
        %v441 = vld [vmem:[#allocation5 + $0xbc] sm:$0xf]
        %v442 = vld [vmem:[%s2] sm:$0x7]
        %v444 = vlaneseq
        %v445 = vshrl.u32 %v444, 7
        %v446 = vsub.s32 0, %v445
        %v447 = vrot.slane %v442, %v446
        %v448 = vlaneseq
        %v449 = vshrl.u32 %v448, 7
        %v450 = vsub.s32 1, %v449
        %v451 = vrot.slane %v442, %v450
        %v452 = vlaneseq
        %v453 = vshrl.u32 %v452, 7
        %v454 = vsub.s32 2, %v453
        %v455 = vrot.slane %v442, %v454
        %v491 = vunpack.c.l.b16 %v410
        %v492 = vunpack.c.h.b16 %v410
        %v493 = vunpack.c.l.b16 %v411
        %v494 = vunpack.c.l.b16 %v412
        %v495 = vunpack.c.h.b16 %v412
        %v496 = vunpack.c.l.b16 %v413
        %v497 = vunpack.c.l.b16 %v414
        %v498 = vunpack.c.h.b16 %v414
        %v499 = vunpack.c.l.b16 %v415
        %v500 = vunpack.c.l.b16 %v416
        %v501 = vunpack.c.h.b16 %v416
        %v502 = vunpack.c.l.b16 %v417
        %v503 = vunpack.c.l.b16 %v418
        %v504 = vunpack.c.h.b16 %v418
        %v505 = vunpack.c.l.b16 %v419
        %v506 = vunpack.c.l.b16 %v420
        %v507 = vunpack.c.h.b16 %v420
        %v508 = vunpack.c.l.b16 %v421
        %v509 = vunpack.c.l.b16 %v422
        %v510 = vunpack.c.h.b16 %v422
        %v511 = vunpack.c.l.b16 %v423
        %v512 = vunpack.c.l.b16 %v424
        %v513 = vunpack.c.h.b16 %v424
        %v514 = vunpack.c.l.b16 %v425
        %v515 = vunpack.c.l.b16 %v426
        %v516 = vunpack.c.h.b16 %v426
        %v517 = vunpack.c.l.b16 %v427
        %v518 = vunpack.c.l.b16 %v428
        %v519 = vunpack.c.h.b16 %v428
        %v520 = vunpack.c.l.b16 %v429
        %v521 = vunpack.c.l.b16 %v430
        %v522 = vunpack.c.h.b16 %v430
        %v523 = vunpack.c.l.b16 %v431
        %v524 = vunpack.c.l.b16 %v432
        %v525 = vunpack.c.h.b16 %v432
        %v526 = vunpack.c.l.b16 %v433
        %v527 = vunpack.c.l.b16 %v434
        %v528 = vunpack.c.h.b16 %v434
        %v529 = vunpack.c.l.b16 %v435
        %v530 = vunpack.c.l.b16 %v436
        %v531 = vunpack.c.h.b16 %v436
        %v532 = vunpack.c.l.b16 %v437
        %v533 = vunpack.c.l.b16 %v438
        %v534 = vunpack.c.h.b16 %v438
        %v535 = vunpack.c.l.b16 %v439
        %v536 = vunpack.c.l.b16 %v440
        %v537 = vunpack.c.h.b16 %v440
        %v538 = vunpack.c.l.b16 %v441
        %v539 = vpack.c.b16 %v494, %v491
        %v540 = vpack.c.b16 %v495, %v492
        %v541 = vpack.c.b16 %v496, %v493
        %v542 = vpack.c.b16 %v500, %v497
        %v543 = vpack.c.b16 %v501, %v498
        %v544 = vpack.c.b16 %v502, %v499
        %v545 = vpack.c.b16 %v506, %v503
        %v546 = vpack.c.b16 %v507, %v504
        %v547 = vpack.c.b16 %v508, %v505
        %v548 = vpack.c.b16 %v512, %v509
        %v549 = vpack.c.b16 %v513, %v510
        %v550 = vpack.c.b16 %v514, %v511
        %v551 = vpack.c.b16 %v518, %v515
        %v552 = vpack.c.b16 %v519, %v516
        %v553 = vpack.c.b16 %v520, %v517
        %v554 = vpack.c.b16 %v524, %v521
        %v555 = vpack.c.b16 %v525, %v522
        %v556 = vpack.c.b16 %v526, %v523
        %v557 = vpack.c.b16 %v530, %v527
        %v558 = vpack.c.b16 %v531, %v528
        %v559 = vpack.c.b16 %v532, %v529
        %v560 = vpack.c.b16 %v536, %v533
        %v561 = vpack.c.b16 %v537, %v534
        %v562 = vpack.c.b16 %v538, %v535
        %587 = vmatprep.subr.bf16.mxu0 %v540
        %588 = vmatpush1.bf16.msra.mxu0 %v539
        %589 = vmatprep.subr.bf16.mxu0 %v543
        %590 = vmatpush1.bf16.msra.mxu0 %v542
        %591 = vmatprep.subr.bf16.mxu0 %v546
        %592 = vmatpush1.bf16.msra.mxu0 %v545
        %593 = vmatprep.subr.bf16.mxu0 %v549
        %594 = vmatpush1.bf16.msra.mxu0 %v548
        %595 = vmatprep.subr.bf16.mxu0 %v552
        %596 = vmatpush1.bf16.msra.mxu0 %v551
        %597 = vmatprep.subr.bf16.mxu0 %v555
        %598 = vmatpush1.bf16.msra.mxu0 %v554
        %599 = vmatprep.subr.bf16.mxu0 %v558
        %600 = vmatpush1.bf16.msra.mxu0 %v557
        %601 = vmatprep.subr.bf16.mxu0 %v561
        %602 = vmatpush1.bf16.msra.mxu0 %v560
        %603 = vmatprep.subr.bf16.mxu0 0
        %604 = vmatpush1.bf16.msra.mxu0 0
        %605 = vmatprep.subr.bf16.mxu0 0
        %606 = vmatpush1.bf16.msra.mxu0 0
        %607 = vmatprep.subr.bf16.mxu0 0
        %608 = vmatpush1.bf16.msra.mxu0 0
        %609 = vmatprep.subr.bf16.mxu0 0
        %610 = vmatpush1.bf16.msra.mxu0 0
        %611 = vmatprep.subr.bf16.mxu0 0
        %612 = vmatpush1.bf16.msra.mxu0 0
        %613 = vmatprep.subr.bf16.mxu0 0
        %614 = vmatpush1.bf16.msra.mxu0 0
        %615 = vmatprep.subr.bf16.mxu0 0
        %616 = vmatpush1.bf16.msra.mxu0 0
        %617 = vmatprep.subr.bf16.mxu0 0
        %618 = vmatpush1.bf16.msra.mxu0 0
        %619 = vmatprep.mubr.bf16.mxu0 0
        %620 = vmatmul.mubr.bf16.gmra.mrb[0].mxu0 %v408
        %v621 = vpop.f32.mrb[0].mxu0
        %v622 = vadd.f32 %v447, %v621
        %v623 = vpop.f32.mrb[0].mxu0
        %v624 = vadd.f32 %v451, %v623
        %v625 = vpop.f32.mrb[0].mxu0
        %v626 = vadd.f32 %v447, %v625
        %v627 = vpop.f32.mrb[0].mxu0
        %v628 = vadd.f32 %v451, %v627
        %629 = vmatprep.mubr.bf16.mxu0 0
        %630 = vmatmul.mubr.bf16.gmra.mrb[0].mxu0 %v409
        %v631 = vpop.f32.mrb[0].mxu0
        %v632 = vadd.f32 %v447, %v631
        %v633 = vpop.f32.mrb[0].mxu0
        %v634 = vadd.f32 %v451, %v633
        %v635 = vpop.f32.mrb[0].mxu0
        %v636 = vadd.f32 %v447, %v635
        %v637 = vpop.f32.mrb[0].mxu0
        %v638 = vadd.f32 %v451, %v637
        %639 = vdwg.mxu0
        %640 = vmatprep.subr.bf16.mxu0 0
        %641 = vmatpush1.bf16.msra.mxu0 %v541
        %642 = vmatprep.subr.bf16.mxu0 0
        %643 = vmatpush1.bf16.msra.mxu0 %v544
        %644 = vmatprep.subr.bf16.mxu0 0
        %645 = vmatpush1.bf16.msra.mxu0 %v547
        %646 = vmatprep.subr.bf16.mxu0 0
        %647 = vmatpush1.bf16.msra.mxu0 %v550
        %648 = vmatprep.subr.bf16.mxu0 0
        %649 = vmatpush1.bf16.msra.mxu0 %v553
        %650 = vmatprep.subr.bf16.mxu0 0
        %651 = vmatpush1.bf16.msra.mxu0 %v556
        %652 = vmatprep.subr.bf16.mxu0 0
        %653 = vmatpush1.bf16.msra.mxu0 %v559
        %654 = vmatprep.subr.bf16.mxu0 0
        %655 = vmatpush1.bf16.msra.mxu0 %v562
        %656 = vmatprep.subr.bf16.mxu0 0
        %657 = vmatpush1.bf16.msra.mxu0 0
        %658 = vmatprep.subr.bf16.mxu0 0
        %659 = vmatpush1.bf16.msra.mxu0 0
        %660 = vmatprep.subr.bf16.mxu0 0
        %661 = vmatpush1.bf16.msra.mxu0 0
        %662 = vmatprep.subr.bf16.mxu0 0
        %663 = vmatpush1.bf16.msra.mxu0 0
        %664 = vmatprep.subr.bf16.mxu0 0
        %665 = vmatpush1.bf16.msra.mxu0 0
        %666 = vmatprep.subr.bf16.mxu0 0
        %667 = vmatpush1.bf16.msra.mxu0 0
        %668 = vmatprep.subr.bf16.mxu0 0
        %669 = vmatpush1.bf16.msra.mxu0 0
        %670 = vmatprep.subr.bf16.mxu0 0
        %671 = vmatpush1.bf16.msra.mxu0 0
        %672 = vmatprep.mubr.bf16.mxu0 0
        %673 = vmatmul.mubr.bf16.gmra.mrb[0].mxu0 %v408
        %v674 = vpop.f32.mrb[0].mxu0
        %v675 = vadd.f32 %v455, %v674
        %v676 = vpop.f32.mrb[0].mxu0
        %v677 = vpop.f32.mrb[0].mxu0
        %v678 = vadd.f32 %v455, %v677
        %v679 = vpop.f32.mrb[0].mxu0
        %680 = vmatprep.mubr.bf16.mxu0 0
        %681 = vmatmul.mubr.bf16.gmra.mrb[0].mxu0 %v409
        %v682 = vpop.f32.mrb[0].mxu0
        %v683 = vadd.f32 %v455, %v682
        %v684 = vpop.f32.mrb[0].mxu0
        %v685 = vpop.f32.mrb[0].mxu0
        %v686 = vadd.f32 %v455, %v685
        %v687 = vpop.f32.mrb[0].mxu0
        %688 = vdwg.mxu0
        %v689 = vld [vmem:[#allocation7] sm:$0xff]
        %v690 = vld [vmem:[#allocation7 + $0x8] sm:$0xff]
        %v691 = vld [vmem:[#allocation7 + $0x10] sm:$0xff]
        %v692 = vld [vmem:[#allocation7 + $0x18] sm:$0xff]
        %v693 = vld [vmem:[#allocation8] sm:$0xff]
        %v694 = vld [vmem:[#allocation8 + $0x8] sm:$0xff]
        %v695 = vld [vmem:[#allocation8 + $0x10] sm:$0xff]
        %v696 = vld [vmem:[#allocation8 + $0x18] sm:$0xff]
        %v697 = vlaneseq
        %v698 = vand.u32 %v697, 127
        %vm699 = vcmp.lt.s32.totalorder %v698, 0
        %v700 = vsub.s32 0, %v698
        %v701 = vsel %vm699, %v700, %v698
        %v702 = vshrl.u32 %v701, 1
        %v703 = vand.u32 %v701, 1
        %v704 = vsub.s32 0, %v703
        %v705 = vsel %vm699, %v704, %v703
        %vm706 = vcmp.ne.s32.totalorder %v705, 0
        %vm707 = vcmp.lt.s32.totalorder %v705, 0
        %vm708 = vmand %vm707, %vm706
        %v709 = vadd.s32 %v705, 2
        %v710 = vsel %vm708, %v709, %v705
        %vm711 = vcmp.eq.s32.totalorder %v710, 0
        %712 = vrot.lane.b32.xlu0 %v622, 127
        %v713 = vpop.permute.xlu0 %712
        %714 = vrot.lane.b32.xlu0 %v626, 127
        %v715 = vpop.permute.xlu0 %714
        %716 = vrot.lane.b32.xlu0 %v632, 127
        %v717 = vpop.permute.xlu0 %716
        %718 = vrot.lane.b32.xlu0 %v636, 127
        %v719 = vpop.permute.xlu0 %718
        %720 = vrot.lane.b32.xlu0 %v622, 1
        %v721 = vpop.permute.xlu0 %720
        %722 = vrot.lane.b32.xlu0 %v626, 1
        %v723 = vpop.permute.xlu0 %722
        %724 = vrot.lane.b32.xlu0 %v632, 1
        %v725 = vpop.permute.xlu0 %724
        %726 = vrot.lane.b32.xlu0 %v636, 1
        %v727 = vpop.permute.xlu0 %726
        %v728 = vsel %vm711, %v713, %v721
        %v729 = vsel %vm711, %v715, %v723
        %v730 = vsel %vm711, %v717, %v725
        %v731 = vsel %vm711, %v719, %v727
        %v732 = vmul.f32 %v622, %v689
        %v733 = vmul.f32 %v626, %v690
        %v734 = vmul.f32 %v632, %v691
        %v735 = vmul.f32 %v636, %v692
        %v736 = vmul.f32 %v728, %v693
        %v737 = vmul.f32 %v729, %v694
        %v738 = vmul.f32 %v730, %v695
        %v739 = vmul.f32 %v731, %v696
        %v740 = vadd.f32 %v732, %v736
        %v741 = vadd.f32 %v733, %v737
        %v742 = vadd.f32 %v734, %v738
        %v743 = vadd.f32 %v735, %v739
        %v744 = vmul.f32 %v740, 0.088388346
        %v745 = vmul.f32 %v741, 0.088388346
        %v746 = vmul.f32 %v742, 0.088388346
        %v747 = vmul.f32 %v743, 0.088388346
        %v748 = vpack.c.bf16 %v745, %v744
        %v749 = vpack.c.bf16 %v747, %v746
        %v752 = vunpack.c.l.b16 %v748
        %v753 = vunpack.c.h.b16 %v748
        %v754 = vunpack.c.l.b16 %v749
        %v755 = vunpack.c.h.b16 %v749
        %v756 = vpack.c.b16 %v752, %v752
        %v757 = vpack.c.b16 %v753, %v753
        %v758 = vpack.c.b16 %v754, %v754
        %v759 = vpack.c.b16 %v755, %v755
        %764 = vst [vmem:[%s382] sm:$0xf] %v756
        %765 = vst [vmem:[%s382 + $0x4] sm:$0xf] %v757
        %766 = vst [vmem:[%s382 + $0x8] sm:$0xf] %v758
        %767 = vst [vmem:[%s382 + $0xc] sm:$0xf] %v759
        %768 = vrot.lane.b32.xlu0 %v624, 127
        %v769 = vpop.permute.xlu0 %768
        %770 = vrot.lane.b32.xlu0 %v628, 127
        %v771 = vpop.permute.xlu0 %770
        %772 = vrot.lane.b32.xlu0 %v634, 127
        %v773 = vpop.permute.xlu0 %772
        %774 = vrot.lane.b32.xlu0 %v638, 127
        %v775 = vpop.permute.xlu0 %774
        %776 = vrot.lane.b32.xlu0 %v624, 1
        %v777 = vpop.permute.xlu0 %776
        %778 = vrot.lane.b32.xlu0 %v628, 1
        %v779 = vpop.permute.xlu0 %778
        %780 = vrot.lane.b32.xlu0 %v634, 1
        %v781 = vpop.permute.xlu0 %780
        %782 = vrot.lane.b32.xlu0 %v638, 1
        %v783 = vpop.permute.xlu0 %782
        %v784 = vsel %vm711, %v769, %v777
        %v785 = vsel %vm711, %v771, %v779
        %v786 = vsel %vm711, %v773, %v781
        %v787 = vsel %vm711, %v775, %v783
        %v788 = vmul.f32 %v624, %v689
        %v789 = vmul.f32 %v628, %v690
        %v790 = vmul.f32 %v634, %v691
        %v791 = vmul.f32 %v638, %v692
        %v792 = vmul.f32 %v784, %v693
        %v793 = vmul.f32 %v785, %v694
        %v794 = vmul.f32 %v786, %v695
        %v795 = vmul.f32 %v787, %v696
        %v796 = vadd.f32 %v788, %v792
        %v797 = vadd.f32 %v789, %v793
        %v798 = vadd.f32 %v790, %v794
        %v799 = vadd.f32 %v791, %v795
        %v800 = vpack.c.bf16 %v797, %v796
        %v801 = vpack.c.bf16 %v799, %v798
        %v804 = vunpack.c.l.b16 %v800
        %v805 = vunpack.c.h.b16 %v800
        %v806 = vunpack.c.l.b16 %v801
        %v807 = vunpack.c.h.b16 %v801
        %v808 = vpack.c.b16 %v804, %v804
        %v809 = vpack.c.b16 %v805, %v805
        %v810 = vpack.c.b16 %v806, %v806
        %v811 = vpack.c.b16 %v807, %v807
        %816 = vst [vmem:[%s389] sm:$0xf] %v808
        %817 = vst [vmem:[%s389 + $0x4] sm:$0xf] %v809
        %818 = vst [vmem:[%s389 + $0x8] sm:$0xf] %v810
        %819 = vst [vmem:[%s389 + $0xc] sm:$0xf] %v811
        %v820 = vpack.c.bf16 %v678, %v675
        %v821 = vpack.c.bf16 %v686, %v683
        %v824 = vunpack.c.l.b16 %v820
        %v825 = vunpack.c.h.b16 %v820
        %v826 = vunpack.c.l.b16 %v821
        %v827 = vunpack.c.h.b16 %v821
        %v828 = vpack.c.b16 %v824, %v824
        %v829 = vpack.c.b16 %v825, %v825
        %v830 = vpack.c.b16 %v826, %v826
        %v831 = vpack.c.b16 %v827, %v827
        %836 = vst [vmem:[%s396] sm:$0xf] %v828
        %837 = vst [vmem:[%s396 + $0x4] sm:$0xf] %v829
        %838 = vst [vmem:[%s396 + $0x8] sm:$0xf] %v830
        %839 = vst [vmem:[%s396 + $0xc] sm:$0xf] %v831
        %s840 = sand.u32 %s174, 1
        %s841 = scalar_lea.sflag [#allocation4], %s840
        %s842 = sand.u32 %s174, 1
        %s843 = smul.addr %s842, 16
        %s844 = scalar_lea.vmem [#allocation10], %s843
        %s845 = sand.u32 %s30, 1
        %s846 = scalar_lea.sflag [#allocation12], %s845
        %s847 = sand.u32 %s202, 1
        %s848 = smul.addr %s847, 16
        %s849 = scalar_lea.vmem [#allocation11], %s848
        %s850 = sand.u32 %s30, 1
        %s851 = scalar_lea.sflag [#allocation12], %s850
        %s852 = sand.u32 %s230, 1
        %s853 = smul.addr %s852, 16
        %s854 = scalar_lea.vmem [#allocation13], %s853
        // Predicated region
        $region57: #{tpu_custom_call.1} parent=39 // pred_check
          %p855 = pneg %p184
        $region58: #{tpu_custom_call.1} parent=39 // pred_check_branch
          %857 = sbr.rel (%p855) target = $region60
        $region59: #{tpu_custom_call.1} parent=39 // pred_region
          %s858 = smul.u32 4, %s35
          %s860 = ssub.s32 256, 256
          %861 = vsyncadd %s841, %s860
          %s862 = smul.addr %s34, 4
          %s863 = sadd.s32 %s858, %s862
          %s864 = smul.addr %s863, 64
          %s865 = scalar_lea.hbm %s5, %s864
          %s866 = sshll.u32 %s844, 4
          %s867 = int_to_ptr.vmem [resolvable:$true] %s866
          %872 = dma.vmem_to_hbm [thread:$0]  %s867, 256, %s865, %s841, 64, 64, 4
        $region60: #{tpu_custom_call.1} parent=39 // pred_fallthru
          _
        // Predicated region
        $region61: #{tpu_custom_call.1} parent=39 // pred_check
          %p873 = pneg %p212
        $region62: #{tpu_custom_call.1} parent=39 // pred_check_branch
          %875 = sbr.rel (%p873) target = $region64
        $region63: #{tpu_custom_call.1} parent=39 // pred_region
          %s876 = smul.u32 4, %s35
          %s878 = ssub.s32 256, 256
          %879 = vsyncadd %s846, %s878
          %s880 = smul.addr %s34, 4
          %s881 = sadd.s32 %s876, %s880
          %s882 = smul.addr %s881, 64
          %s883 = scalar_lea.hbm %s6, %s882
          %s884 = sshll.u32 %s849, 4
          %s885 = int_to_ptr.vmem [resolvable:$true] %s884
          %890 = dma.vmem_to_hbm [thread:$0]  %s885, 256, %s883, %s846, 64, 64, 4
        $region64: #{tpu_custom_call.1} parent=39 // pred_fallthru
          _
        // Predicated region
        $region65: #{tpu_custom_call.1} parent=39 // pred_check
          %p891 = pneg %p240
        $region66: #{tpu_custom_call.1} parent=39 // pred_check_branch
          %893 = sbr.rel (%p891) target = $region68
        $region67: #{tpu_custom_call.1} parent=39 // pred_region
          %s894 = smul.u32 4, %s35
          %s896 = ssub.s32 256, 256
          %897 = vsyncadd %s851, %s896
          %s898 = smul.addr %s34, 4
          %s899 = sadd.s32 %s894, %s898
          %s900 = smul.addr %s899, 64
          %s901 = scalar_lea.hbm %s7, %s900
          %s902 = sshll.u32 %s854, 4
          %s903 = int_to_ptr.vmem [resolvable:$true] %s902
          %908 = dma.vmem_to_hbm [thread:$0]  %s903, 256, %s901, %s851, 64, 64, 4
        $region68: #{tpu_custom_call.1} parent=39 // pred_fallthru
          _
      $region40: #{tpu_custom_call.1} parent=5 // pred_fallthru
        _
      %p909 = scmp.le.s32.totalorder 2, %s25
      // Predicated region
      $region69: #{tpu_custom_call.1} parent=5 // pred_check
        %p910 = pneg %p909
      $region70: #{tpu_custom_call.1} parent=5 // pred_check_branch
        %912 = sbr.rel (%p910) target = $region72
      $region71: #{tpu_custom_call.1} parent=5 // pred_region
        %s913 = ssub.s32 %s25, 2
        // Predicated region
        $region73: #{tpu_custom_call.1} parent=71 // pred_check
          %p914 = pneg %p190
        $region74: #{tpu_custom_call.1} parent=71 // pred_check_branch
          %916 = sbr.rel (%p914) target = $region76
        $region75: #{tpu_custom_call.1} parent=71 // pred_region
          %s917 = sand.u32 %s175, 1
          %s918 = scalar_lea.sflag [#allocation4], %s917
          %s919 = sand.u32 %s175, 1
          %s920 = smul.addr %s919, 16
          %s921 = scalar_lea.vmem [#allocation10], %s920
          %922 = dma.done %s918, 256
        $region76: #{tpu_custom_call.1} parent=71 // pred_fallthru
          _
        // Predicated region
        $region77: #{tpu_custom_call.1} parent=71 // pred_check
          %p923 = pneg %p218
        $region78: #{tpu_custom_call.1} parent=71 // pred_check_branch
          %925 = sbr.rel (%p923) target = $region80
        $region79: #{tpu_custom_call.1} parent=71 // pred_region
          %s926 = sand.u32 %s31, 1
          %s927 = scalar_lea.sflag [#allocation12], %s926
          %s928 = sand.u32 %s203, 1
          %s929 = smul.addr %s928, 16
          %s930 = scalar_lea.vmem [#allocation11], %s929
          %931 = dma.done %s927, 256
        $region80: #{tpu_custom_call.1} parent=71 // pred_fallthru
          _
        // Predicated region
        $region81: #{tpu_custom_call.1} parent=71 // pred_check
          %p932 = pneg %p246
        $region82: #{tpu_custom_call.1} parent=71 // pred_check_branch
          %934 = sbr.rel (%p932) target = $region84
        $region83: #{tpu_custom_call.1} parent=71 // pred_region
          %s935 = sand.u32 %s31, 1
          %s936 = scalar_lea.sflag [#allocation12], %s935
          %s937 = sand.u32 %s231, 1
          %s938 = smul.addr %s937, 16
          %s939 = scalar_lea.vmem [#allocation13], %s938
          %940 = dma.done %s936, 256
        $region84: #{tpu_custom_call.1} parent=71 // pred_fallthru
          _
      $region72: #{tpu_custom_call.1} parent=5 // pred_fallthru
        _
    $region6: #{tpu_custom_call.1} parent=1 // loop_footer
      %s29 = sadd.s32 1, %s25
    $region7: #{tpu_custom_call.1} parent=1 // loop_footer_branch
      %24 = sbr.rel target = $region3
    $region8: #{tpu_custom_call.1} parent=1 // loop_exit
      _
    %941 = vsyncpa [#allocation3], 1
    %s942 = scalar_lea.sflag [#allocation3], 1
    %943 = vsyncpa %s942, 1
    %944 = vsyncpa [#allocation6], 1
    %945 = vsyncpa [#allocation9], 1
    %946 = vsyncpa [#allocation4], 1
    %s947 = scalar_lea.sflag [#allocation4], 1
    %948 = vsyncpa %s947, 1
    %949 = vsyncpa [#allocation12], 1
    %s950 = scalar_lea.sflag [#allocation12], 1
    %951 = vsyncpa %s950, 1

</llo_original>
